<compile_context>
chip_gen: v7x
topology: tpu7x:2x2x1
jax: 0.10.0
libtpu: 0.0.40
codegen_flags: <defaults>
</compile_context>

<pallas_src>
import functools

import jax
import jax.numpy as jnp
from jax.experimental import pallas as pl
from jax.experimental.pallas import tpu as pltpu

LANES = 128        # lane width (last dim of the slab)
BLOCK_ROWS = 2048  # 2048 * 128 * 4 B = 1 MiB per f32 block; multiple of 16 for bf16


def _accumulate(out_ref, x, t, valid, eps):
    """Adds the five partial sums of one block into the SMEM accumulator/output."""
    prod = x * t
    xc = jnp.clip(x, eps, 1.0 - eps)
    tlx = t * jnp.log(xc)                    # t * log(clip(x))
    ulx = (1.0 - t) * jnp.log(1.0 - xc)      # (1-t) * log(1 - clip(x))
    if valid is not None:
        # Mask *after* all element ops via select (never multiply-by-mask), so
        # garbage in the out-of-bounds rows can't poison the sums.
        x = jnp.where(valid, x, 0.0)
        t = jnp.where(valid, t, 0.0)
        prod = jnp.where(valid, prod, 0.0)
        tlx = jnp.where(valid, tlx, 0.0)
        ulx = jnp.where(valid, ulx, 0.0)
    out_ref[0] += jnp.sum(prod)
    out_ref[1] += jnp.sum(x)
    out_ref[2] += jnp.sum(t)
    out_ref[3] += jnp.sum(tlx)
    out_ref[4] += jnp.sum(ulx)


def _combo_loss_sums_kernel(x_ref, t_ref, out_ref, *, valid_rows, needs_mask, eps):
    """Reduces [sum(x*t), sum(x), sum(t), sum(t*log xc), sum((1-t)*log(1-xc))]."""
    step = pl.program_id(0)

    @pl.when(step == 0)
    def _():
        for q in range(5):
            out_ref[q] = 0.0

    x = x_ref[...].astype(jnp.float32)
    t = t_ref[...].astype(jnp.float32)
    block_rows = x.shape[0]

    if needs_mask:
        last = pl.num_programs(0) - 1

        @pl.when(step != last)
        def _():
            _accumulate(out_ref, x, t, None, eps)

        @pl.when(step == last)
        def _():
            # Row-level validity: rows are always fully valid (n_main % 128 == 0),
            # so compare global row index against the valid row count.
            row_ids = jax.lax.broadcasted_iota(jnp.int32, x.shape, 0)
            valid = (step * block_rows + row_ids) < valid_rows
            _accumulate(out_ref, x, t, valid, eps)
    else:
        _accumulate(out_ref, x, t, None, eps)


def combo_loss(inputs, targets, *, alpha=0.5, ce_ratio=0.5, smooth=1.0, eps=1e-9):
    """Pallas implementation of ComboLoss.forward. Returns a scalar f32."""
    # Keep the native dtype; the kernel upcasts per block (halves HBM bytes for bf16).
    x = inputs.reshape(-1)
    t = targets.reshape(-1)
    n = x.shape[0]

    n_main = (n // LANES) * LANES
    rows = n_main // LANES

    sums = jnp.zeros((5,), jnp.float32)

    if rows > 0:
        block_rows = min(BLOCK_ROWS, rows)   # full-dim block if the slab is small
        grid = pl.cdiv(rows, block_rows)
        needs_mask = (rows % block_rows) != 0

        # When n is already a multiple of 128 this is a pure (free) reshape,
        # no padded copies of the inputs are ever materialized in HBM.
        x_main = (x if n_main == n else x[:n_main]).reshape(rows, LANES)
        t_main = (t if n_main == n else t[:n_main]).reshape(rows, LANES)

        kernel = functools.partial(
            _combo_loss_sums_kernel,
            valid_rows=rows, needs_mask=needs_mask, eps=float(eps))

        sums = pl.pallas_call(
            kernel,
            out_shape=jax.ShapeDtypeStruct((5,), jnp.float32),
            grid_spec=pltpu.PrefetchScalarGridSpec(
                num_scalar_prefetch=0,
                grid=(grid,),
                in_specs=[
                    pl.BlockSpec((block_rows, LANES), lambda i: (i, 0)),
                    pl.BlockSpec((block_rows, LANES), lambda i: (i, 0)),
                ],
                out_specs=pl.BlockSpec(memory_space=pltpu.SMEM),
            ),
            compiler_params=pltpu.CompilerParams(
                dimension_semantics=("arbitrary",)),
        )(x_main, t_main)

    if n_main != n:
        # Ragged tail (< 128 elements): cheaper in plain JAX than copying/padding
        # both full inputs through HBM.
        xt = x[n_main:].astype(jnp.float32)
        tt = t[n_main:].astype(jnp.float32)
        xc = jnp.clip(xt, eps, 1.0 - eps)
        tail = jnp.stack([
            jnp.sum(xt * tt),
            jnp.sum(xt),
            jnp.sum(tt),
            jnp.sum(tt * jnp.log(xc)),
            jnp.sum((1.0 - tt) * jnp.log(1.0 - xc)),
        ])
        sums = sums + tail

    intersection, sum_x, sum_t, s_tlx, s_ulx = (
        sums[0], sums[1], sums[2], sums[3], sums[4])

    dice = (2.0 * intersection + smooth) / (sum_x + sum_t + smooth)
    # alpha weights hoisted out of the per-element kernel; same math as
    # -(alpha * (t*log(xc) + (1-alpha)*(1-t)*log(1-xc))), applied post-sum.
    sum_ce = -(alpha * (s_tlx + (1.0 - alpha) * s_ulx))
    weighted_ce = sum_ce / n
    return ce_ratio * weighted_ce - (1.0 - ce_ratio) * dice


def _reference_combo_loss(inputs, targets, alpha=0.5, ce_ratio=0.5,
                          smooth=1.0, eps=1e-9):
    x = inputs.reshape(-1).astype(jnp.float32)
    t = targets.reshape(-1).astype(jnp.float32)
    intersection = jnp.sum(x * t)
    dice = (2.0 * intersection + smooth) / (jnp.sum(x) + jnp.sum(t) + smooth)
    xc = jnp.clip(x, eps, 1.0 - eps)
    out = -(alpha * (t * jnp.log(xc)
                     + (1.0 - alpha) * (1.0 - t) * jnp.log(1.0 - xc)))
    weighted_ce = jnp.mean(out)
    return ce_ratio * weighted_ce - (1.0 - ce_ratio) * dice


if __name__ == "__main__":
    key = jax.random.PRNGKey(0)
    k1, k2, k3, k4 = jax.random.split(key, 4)

    # Primary test: NCHW probabilities and binary targets (n % 128 == 0 path).
    shape = (2, 4, 16, 16)
    inputs = jax.nn.sigmoid(jax.random.normal(k1, shape, dtype=jnp.float32))
    targets = (jax.random.uniform(k2, shape) > 0.5).astype(jnp.float32)

    out = jax.block_until_ready(combo_loss(inputs, targets))
    ref = jax.block_until_ready(_reference_combo_loss(inputs, targets))
    assert jnp.allclose(out, ref, atol=1e-5, rtol=1e-5), (out, ref)

    # Secondary test: ragged size (1048 elements -> 8 full rows + 24-element tail).
    shape2 = (1, 1, 8, 131)
    inputs2 = jax.nn.sigmoid(jax.random.normal(k3, shape2, dtype=jnp.float32))
    targets2 = (jax.random.uniform(k4, shape2) > 0.5).astype(jnp.float32)

    out2 = jax.block_until_ready(combo_loss(inputs2, targets2))
    ref2 = jax.block_until_ready(_reference_combo_loss(inputs2, targets2))
    assert jnp.allclose(out2, ref2, atol=1e-5, rtol=1e-5), (out2, ref2)

    print("KERNEL_OK")
</pallas_src>

<mosaic_0001>
module attributes {stable_mosaic.version = 11 : i64} {
  func.func @_combo_loss_sums_kernel(%arg0: i32, %arg1: memref<16x128xf32, #tpu.memory_space<vmem>>, %arg2: memref<16x128xf32, #tpu.memory_space<vmem>>, %arg3: memref<5xf32, #tpu.memory_space<smem>>) attributes {dimension_semantics = [#tpu.dimension_semantics<arbitrary>], iteration_bounds = array<i64: 1>, scalar_prefetch = 0 : i64, scratch_operands = 0 : i64, tpu.core_type = #tpu.core_type<tc>, window_params = [{transform_indices = @transform_0, window_bounds = array<i64: 16, 128>}, {transform_indices = @transform_1, window_bounds = array<i64: 16, 128>}, {transform_indices = @transform_2, window_bounds = array<i64: 5>}]} {
    %c0_i32 = arith.constant 0 : i32
    %0 = arith.cmpi eq, %arg0, %c0_i32 : i32
    %1 = arith.extui %0 : i1 to i32
    %c0_i32_0 = arith.constant 0 : i32
    %2 = arith.cmpi ne, %1, %c0_i32_0 : i32
    scf.if %2 {
      %cst_18 = arith.constant 0.000000e+00 : f32
      %c0_19 = arith.constant 0 : index
      %53 = memref.load %arg3[%c0_19] : memref<5xf32, #tpu.memory_space<smem>>
      memref.store %cst_18, %arg3[%c0_19] : memref<5xf32, #tpu.memory_space<smem>>
      %cst_20 = arith.constant 0.000000e+00 : f32
      %c1_21 = arith.constant 1 : index
      %54 = memref.load %arg3[%c1_21] : memref<5xf32, #tpu.memory_space<smem>>
      memref.store %cst_20, %arg3[%c1_21] : memref<5xf32, #tpu.memory_space<smem>>
      %cst_22 = arith.constant 0.000000e+00 : f32
      %c2_23 = arith.constant 2 : index
      %55 = memref.load %arg3[%c2_23] : memref<5xf32, #tpu.memory_space<smem>>
      memref.store %cst_22, %arg3[%c2_23] : memref<5xf32, #tpu.memory_space<smem>>
      %cst_24 = arith.constant 0.000000e+00 : f32
      %c3_25 = arith.constant 3 : index
      %56 = memref.load %arg3[%c3_25] : memref<5xf32, #tpu.memory_space<smem>>
      memref.store %cst_24, %arg3[%c3_25] : memref<5xf32, #tpu.memory_space<smem>>
      %cst_26 = arith.constant 0.000000e+00 : f32
      %c4_27 = arith.constant 4 : index
      %57 = memref.load %arg3[%c4_27] : memref<5xf32, #tpu.memory_space<smem>>
      memref.store %cst_26, %arg3[%c4_27] : memref<5xf32, #tpu.memory_space<smem>>
    } else {
    }
    %c0 = arith.constant 0 : index
    %c0_1 = arith.constant 0 : index
    %3 = vector.load %arg1[%c0, %c0_1] : memref<16x128xf32, #tpu.memory_space<vmem>>, vector<16x128xf32>
    %c0_2 = arith.constant 0 : index
    %c0_3 = arith.constant 0 : index
    %4 = vector.load %arg2[%c0_2, %c0_3] : memref<16x128xf32, #tpu.memory_space<vmem>>, vector<16x128xf32>
    %5 = arith.mulf %3, %4 : vector<16x128xf32>
    %cst = arith.constant 9.99999971E-10 : f32
    %cst_4 = arith.constant 1.000000e+00 : f32
    %6 = vector.broadcast %cst : f32 to vector<16x128xf32>
    %7 = arith.maximumf %6, %3 : vector<16x128xf32>
    %8 = vector.broadcast %cst_4 : f32 to vector<16x128xf32>
    %9 = arith.minimumf %8, %7 : vector<16x128xf32>
    %10 = math.log %9 : vector<16x128xf32>
    %11 = arith.mulf %4, %10 : vector<16x128xf32>
    %cst_5 = arith.constant 1.000000e+00 : f32
    %12 = vector.broadcast %cst_5 : f32 to vector<16x128xf32>
    %13 = arith.subf %12, %4 : vector<16x128xf32>
    %cst_6 = arith.constant 1.000000e+00 : f32
    %14 = vector.broadcast %cst_6 : f32 to vector<16x128xf32>
    %15 = arith.subf %14, %9 : vector<16x128xf32>
    %16 = math.log %15 : vector<16x128xf32>
    %17 = arith.mulf %13, %16 : vector<16x128xf32>
    %c0_7 = arith.constant 0 : index
    %18 = memref.load %arg3[%c0_7] : memref<5xf32, #tpu.memory_space<smem>>
    %19 = vector.shape_cast %5 : vector<16x128xf32> to vector<1x16x128xf32>
    %cst_8 = arith.constant dense<0.000000e+00> : vector<1xf32>
    %20 = vector.multi_reduction <add>, %19, %cst_8 [1, 2] : vector<1x16x128xf32> to vector<1xf32>
    %21 = vector.shape_cast %20 : vector<1xf32> to vector<1x1x1xf32>
    %22 = vector.extract %21[0, 0, 0] : f32 from vector<1x1x1xf32>
    %23 = arith.addf %18, %22 : f32
    %c0_9 = arith.constant 0 : index
    %24 = memref.load %arg3[%c0_9] : memref<5xf32, #tpu.memory_space<smem>>
    memref.store %23, %arg3[%c0_9] : memref<5xf32, #tpu.memory_space<smem>>
    %c1 = arith.constant 1 : index
    %25 = memref.load %arg3[%c1] : memref<5xf32, #tpu.memory_space<smem>>
    %26 = vector.shape_cast %3 : vector<16x128xf32> to vector<1x16x128xf32>
    %cst_10 = arith.constant dense<0.000000e+00> : vector<1xf32>
    %27 = vector.multi_reduction <add>, %26, %cst_10 [1, 2] : vector<1x16x128xf32> to vector<1xf32>
    %28 = vector.shape_cast %27 : vector<1xf32> to vector<1x1x1xf32>
    %29 = vector.extract %28[0, 0, 0] : f32 from vector<1x1x1xf32>
    %30 = arith.addf %25, %29 : f32
    %c1_11 = arith.constant 1 : index
    %31 = memref.load %arg3[%c1_11] : memref<5xf32, #tpu.memory_space<smem>>
    memref.store %30, %arg3[%c1_11] : memref<5xf32, #tpu.memory_space<smem>>
    %c2 = arith.constant 2 : index
    %32 = memref.load %arg3[%c2] : memref<5xf32, #tpu.memory_space<smem>>
    %33 = vector.shape_cast %4 : vector<16x128xf32> to vector<1x16x128xf32>
    %cst_12 = arith.constant dense<0.000000e+00> : vector<1xf32>
    %34 = vector.multi_reduction <add>, %33, %cst_12 [1, 2] : vector<1x16x128xf32> to vector<1xf32>
    %35 = vector.shape_cast %34 : vector<1xf32> to vector<1x1x1xf32>
    %36 = vector.extract %35[0, 0, 0] : f32 from vector<1x1x1xf32>
    %37 = arith.addf %32, %36 : f32
    %c2_13 = arith.constant 2 : index
    %38 = memref.load %arg3[%c2_13] : memref<5xf32, #tpu.memory_space<smem>>
    memref.store %37, %arg3[%c2_13] : memref<5xf32, #tpu.memory_space<smem>>
    %c3 = arith.constant 3 : index
    %39 = memref.load %arg3[%c3] : memref<5xf32, #tpu.memory_space<smem>>
    %40 = vector.shape_cast %11 : vector<16x128xf32> to vector<1x16x128xf32>
    %cst_14 = arith.constant dense<0.000000e+00> : vector<1xf32>
    %41 = vector.multi_reduction <add>, %40, %cst_14 [1, 2] : vector<1x16x128xf32> to vector<1xf32>
    %42 = vector.shape_cast %41 : vector<1xf32> to vector<1x1x1xf32>
    %43 = vector.extract %42[0, 0, 0] : f32 from vector<1x1x1xf32>
    %44 = arith.addf %39, %43 : f32
    %c3_15 = arith.constant 3 : index
    %45 = memref.load %arg3[%c3_15] : memref<5xf32, #tpu.memory_space<smem>>
    memref.store %44, %arg3[%c3_15] : memref<5xf32, #tpu.memory_space<smem>>
    %c4 = arith.constant 4 : index
    %46 = memref.load %arg3[%c4] : memref<5xf32, #tpu.memory_space<smem>>
    %47 = vector.shape_cast %17 : vector<16x128xf32> to vector<1x16x128xf32>
    %cst_16 = arith.constant dense<0.000000e+00> : vector<1xf32>
    %48 = vector.multi_reduction <add>, %47, %cst_16 [1, 2] : vector<1x16x128xf32> to vector<1xf32>
    %49 = vector.shape_cast %48 : vector<1xf32> to vector<1x1x1xf32>
    %50 = vector.extract %49[0, 0, 0] : f32 from vector<1x1x1xf32>
    %51 = arith.addf %46, %50 : f32
    %c4_17 = arith.constant 4 : index
    %52 = memref.load %arg3[%c4_17] : memref<5xf32, #tpu.memory_space<smem>>
    memref.store %51, %arg3[%c4_17] : memref<5xf32, #tpu.memory_space<smem>>
    return
  }
  func.func @transform_0(%arg0: i32) -> (i32, i32) {
    %c0_i32 = arith.constant 0 : i32
    %c0_i32_0 = arith.constant 0 : i32
    return %arg0, %c0_i32 : i32, i32
  }
  func.func @transform_1(%arg0: i32) -> (i32, i32) {
    %c0_i32 = arith.constant 0 : i32
    %c0_i32_0 = arith.constant 0 : i32
    return %arg0, %c0_i32 : i32, i32
  }
  func.func @transform_2(%arg0: i32) -> i32 {
    %c0_i32 = arith.constant 0 : i32
    %c0_i32_0 = arith.constant 0 : i32
    return %c0_i32 : i32
  }
}

</mosaic_0001>

<llo_original>
// kernel: tpu_custom_call.1
$region0: #{tpu_custom_call.1}
  #allocation0 [shape = 'u32[]', space=smem, size = 0x4, offset = 0x4, fixed_abs, tag = 'smem constant byte address 0x4 - core index']
  #allocation1 [shape = 'u32[144,128]{1,0:T(1,128)}', space=vmem, size = 0x12000, scoped, tag = 'internal scratch']
  %s0 = inlined_call_operand.hbm [shape: f32[16,128], index: 0, kind: input, shape index: {}]
  %s1 = inlined_call_operand.hbm [shape: f32[16,128], index: 1, kind: input, shape index: {}]
  %s2 = inlined_call_operand.hbm [shape: f32[5], index: 2, kind: output, shape index: {}]
  %s3 = sld [smem:[#allocation0]]
  $region30: #{tpu_custom_call.1} parent=0
    _
  %s5 = ssub.s32 1, %s3
  %s6 = scalar_select 0, %s5, %s3
  $region1: #{tpu_custom_call.1} parent=0
    #allocation2 [shape = 'u8[8192]{0}', space=vmem, size = 0x2000, scoped, tag = 'input window, operand 0, single buffered']
    #allocation3 [shape = 's32[1]{0}', space=sflag, size = 0x4, scoped, tag = 'scoped memory for tpu_custom_call.1']
    #allocation4 [shape = 's32[1]{0}', space=sflag, size = 0x4, scoped, tag = 'scoped memory for tpu_custom_call.1']
    #allocation5 [shape = 'u8[8192]{0}', space=vmem, size = 0x2000, scoped, tag = 'input window, operand 1, single buffered']
    #allocation6 [shape = 's32[1]{0}', space=sflag, size = 0x4, scoped, tag = 'scoped memory for tpu_custom_call.1']
    #allocation7 [shape = 'u8[512]{0}', space=smem, size = 0x200, scoped, tag = 'output window, operand 0, single buffered']
    %7 = vsyncpa [#allocation3], 0
    %8 = vsyncpa [#allocation6], 0
    %9 = vsyncpa [#allocation4], 0
    // Predicated region
    $region2: #{tpu_custom_call.1} parent=1 // pred_check
      _
    $region3: #{tpu_custom_call.1} parent=1 // pred_check_branch
      %11 = sbr.rel (0) target = $region5
    $region4: #{tpu_custom_call.1} parent=1 // pred_region
      %s13 = ssub.s32 256, 256
      %14 = vsyncadd [#allocation3], %s13
      %s15 = sshll.u32 [#allocation2], 4
      %s16 = int_to_ptr.vmem [resolvable:$true] %s15
      %21 = dma.hbm_to_vmem [thread:$0]  %s0, 256, %s16, [#allocation3], 128, 128, 8
    $region5: #{tpu_custom_call.1} parent=1 // pred_fallthru
      _
    // Predicated region
    $region6: #{tpu_custom_call.1} parent=1 // pred_check
      _
    $region7: #{tpu_custom_call.1} parent=1 // pred_check_branch
      %23 = sbr.rel (0) target = $region9
    $region8: #{tpu_custom_call.1} parent=1 // pred_region
      %s25 = ssub.s32 256, 256
      %26 = vsyncadd [#allocation6], %s25
      %s27 = sshll.u32 [#allocation5], 4
      %s28 = int_to_ptr.vmem [resolvable:$true] %s27
      %33 = dma.hbm_to_vmem [thread:$0]  %s1, 256, %s28, [#allocation6], 128, 128, 8
    $region9: #{tpu_custom_call.1} parent=1 // pred_fallthru
      _
    // Predicated region
    $region10: #{tpu_custom_call.1} parent=1 // pred_check
      _
    $region11: #{tpu_custom_call.1} parent=1 // pred_check_branch
      %35 = sbr.rel (0) target = $region13
    $region12: #{tpu_custom_call.1} parent=1 // pred_region
      %36 = dma.done [#allocation3], 256
    $region13: #{tpu_custom_call.1} parent=1 // pred_fallthru
      _
    // Predicated region
    $region14: #{tpu_custom_call.1} parent=1 // pred_check
      _
    $region15: #{tpu_custom_call.1} parent=1 // pred_check_branch
      %38 = sbr.rel (0) target = $region17
    $region16: #{tpu_custom_call.1} parent=1 // pred_region
      %39 = dma.done [#allocation6], 256
    $region17: #{tpu_custom_call.1} parent=1 // pred_fallthru
      _
    %p40 = scmp.eq.s32.totalorder 0, 0
    // Predicated region
    $region18: #{tpu_custom_call.1} parent=1 // pred_check
      %p41 = pneg %p40
    $region19: #{tpu_custom_call.1} parent=1 // pred_check_branch
      %43 = sbr.rel (%p41) target = $region21
    $region20: #{tpu_custom_call.1} parent=1 // pred_region
      %s44 = scalar_lea.smem [#allocation7], 0
      %45 = sst [smem:[%s44]] 0.0
      %s46 = scalar_lea.smem [#allocation7], 1
      %47 = sst [smem:[%s46]] 0.0
      %s48 = scalar_lea.smem [#allocation7], 2
      %49 = sst [smem:[%s48]] 0.0
      %s50 = scalar_lea.smem [#allocation7], 3
      %51 = sst [smem:[%s50]] 0.0
      %s52 = scalar_lea.smem [#allocation7], 4
      %53 = sst [smem:[%s52]] 0.0
    $region21: #{tpu_custom_call.1} parent=1 // pred_fallthru
      _
    %v54 = vld [vmem:[#allocation2] sm:$0xff]
    %v55 = vld [vmem:[#allocation2 + $0x8] sm:$0xff]
    %v56 = vld [vmem:[#allocation5] sm:$0xff]
    %v57 = vld [vmem:[#allocation5 + $0x8] sm:$0xff]
    %v58 = vmul.f32 %v54, %v56
    %v59 = vmul.f32 %v55, %v57
    %v60 = vmax.f32 %v54, 1e-09
    %v61 = vmax.f32 %v55, 1e-09
    %v62 = vmin.f32 %v60, 1.0
    %v63 = vmin.f32 %v61, 1.0
    %v64 = vlog2.pop %v62
    %v65 = vmul.f32 %v64, 0.6931472
    %v66 = vlog2.pop %v63
    %v67 = vmul.f32 %v66, 0.6931472
    %v68 = vmul.f32 %v56, %v65
    %v69 = vmul.f32 %v57, %v67
    %v70 = vsub.f32 1.0, %v56
    %v71 = vsub.f32 1.0, %v57
    %v72 = vsub.f32 1.0, %v62
    %v73 = vsub.f32 1.0, %v63
    %v74 = vlog2.pop %v72
    %v75 = vmul.f32 %v74, 0.6931472
    %v76 = vlog2.pop %v73
    %v77 = vmul.f32 %v76, 0.6931472
    %v78 = vmul.f32 %v70, %v75
    %v79 = vmul.f32 %v71, %v77
    %s80 = sld [smem:[#allocation7]]
    %v81 = vadd.f32 %v58, %v59
    %82 = vadd.xlane.f32.xlu0 %v81
    %v83 = vpop.xlane.xlu0 %82
    %v84 = vrot.slane %v83, 4
    %v85 = vadd.f32 %v83, %v84
    %v86 = vrot.slane %v85, 2
    %v87 = vadd.f32 %v85, %v86
    %v88 = vrot.slane %v87, 1
    %v89 = vadd.f32 %v87, %v88
    %s90 = vtos %v89
    %s91 = sadd.f32 %s80, %s90
    %s92 = scalar_lea.smem [#allocation7], 0
    %93 = sst [smem:[%s92]] %s91
    %s94 = sld [smem:[#allocation7 + $0x1]]
    %v95 = vadd.f32 %v54, %v55
    %96 = vadd.xlane.f32.xlu0 %v95
    %v97 = vpop.xlane.xlu0 %96
    %v98 = vrot.slane %v97, 4
    %v99 = vadd.f32 %v97, %v98
    %v100 = vrot.slane %v99, 2
    %v101 = vadd.f32 %v99, %v100
    %v102 = vrot.slane %v101, 1
    %v103 = vadd.f32 %v101, %v102
    %s104 = vtos %v103
    %s105 = sadd.f32 %s94, %s104
    %s106 = scalar_lea.smem [#allocation7], 1
    %107 = sst [smem:[%s106]] %s105
    %s108 = sld [smem:[#allocation7 + $0x2]]
    %v109 = vadd.f32 %v56, %v57
    %110 = vadd.xlane.f32.xlu0 %v109
    %v111 = vpop.xlane.xlu0 %110
    %v112 = vrot.slane %v111, 4
    %v113 = vadd.f32 %v111, %v112
    %v114 = vrot.slane %v113, 2
    %v115 = vadd.f32 %v113, %v114
    %v116 = vrot.slane %v115, 1
    %v117 = vadd.f32 %v115, %v116
    %s118 = vtos %v117
    %s119 = sadd.f32 %s108, %s118
    %s120 = scalar_lea.smem [#allocation7], 2
    %121 = sst [smem:[%s120]] %s119
    %s122 = sld [smem:[#allocation7 + $0x3]]
    %v123 = vadd.f32 %v68, %v69
    %124 = vadd.xlane.f32.xlu0 %v123
    %v125 = vpop.xlane.xlu0 %124
    %v126 = vrot.slane %v125, 4
    %v127 = vadd.f32 %v125, %v126
    %v128 = vrot.slane %v127, 2
    %v129 = vadd.f32 %v127, %v128
    %v130 = vrot.slane %v129, 1
    %v131 = vadd.f32 %v129, %v130
    %s132 = vtos %v131
    %s133 = sadd.f32 %s122, %s132
    %s134 = scalar_lea.smem [#allocation7], 3
    %135 = sst [smem:[%s134]] %s133
    %s136 = sld [smem:[#allocation7 + $0x4]]
    %v137 = vadd.f32 %v78, %v79
    %138 = vadd.xlane.f32.xlu0 %v137
    %v139 = vpop.xlane.xlu0 %138
    %v140 = vrot.slane %v139, 4
    %v141 = vadd.f32 %v139, %v140
    %v142 = vrot.slane %v141, 2
    %v143 = vadd.f32 %v141, %v142
    %v144 = vrot.slane %v143, 1
    %v145 = vadd.f32 %v143, %v144
    %s146 = vtos %v145
    %s147 = sadd.f32 %s136, %s146
    %s148 = scalar_lea.smem [#allocation7], 4
    %149 = sst [smem:[%s148]] %s147
    // Predicated region
    $region22: #{tpu_custom_call.1} parent=1 // pred_check
      _
    $region23: #{tpu_custom_call.1} parent=1 // pred_check_branch
      %151 = sbr.rel (0) target = $region25
    $region24: #{tpu_custom_call.1} parent=1 // pred_region
      %s153 = ssub.s32 16, 16
      %154 = vsyncadd [#allocation4], %s153
      %157 = dma.smem_to_hbm [#allocation7], 16, %s2, [#allocation4]
    $region25: #{tpu_custom_call.1} parent=1 // pred_fallthru
      _
    // Predicated region
    $region26: #{tpu_custom_call.1} parent=1 // pred_check
      _
    $region27: #{tpu_custom_call.1} parent=1 // pred_check_branch
      %159 = sbr.rel (0) target = $region29
    $region28: #{tpu_custom_call.1} parent=1 // pred_region
      %160 = dma.done [#allocation4], 16
    $region29: #{tpu_custom_call.1} parent=1 // pred_fallthru
      _
    %161 = sfence
    %162 = vsyncpa [#allocation3], 1
    %163 = vsyncpa [#allocation6], 1
    %164 = vsyncpa [#allocation4], 1

</llo_original>
